<compile_context>
chip_gen: v7x
topology: tpu7x:2x2x1
jax: 0.10.0
libtpu: 0.0.40
codegen_flags: <defaults>
</compile_context>

<pallas_src>
import functools

import jax
import jax.numpy as jnp
from jax import lax
from jax.experimental import pallas as pl
from jax.experimental.pallas import tpu as pltpu


def _round_up(n: int, m: int) -> int:
    return ((n + m - 1) // m) * m


def _device_kind() -> str:
    try:
        return jax.devices()[0].device_kind.lower()
    except Exception:
        return ""


def word_encoder_kernel(band_off_ref, x_ref, scores_ref, bounds_ref, out_ref,
                        *, band: int):
    """Fused masked-softmax + weighted-sum for one tile of tW words.

    band_off_ref: [n_tiles] i32 SMEM (scalar prefetch)  128-aligned band start
    x_ref:        [T_pad, D_pad] bf16 VMEM, resident (single-buffered)
    scores_ref:   [1, T_pad]     f32  VMEM, resident (single-buffered)
    bounds_ref:   [tW, 2]        i32  VMEM  (start, end) per word
    out_ref:      [tW, D_pad]    f32  VMEM  word representations
    """
    i = pl.program_id(0)
    off = pl.multiple_of(band_off_ref[i], 128)

    # Banded views: only the subtokens this word tile can attend to.
    xb = x_ref[pl.ds(off, band), :]                    # [band, D_pad] bf16
    sb = scores_ref[:, pl.ds(off, band)]               # [1, band]     f32

    tw = out_ref.shape[0]
    starts = bounds_ref[:, 0:1]                        # [tW, 1] i32
    ends = bounds_ref[:, 1:2]                          # [tW, 1] i32

    # mask[i, j] = start_i <= (off + j) < end_i;  log(mask) == 0 / -inf.
    # Finite fill keeps padded tiles and empty spans NaN-free (empty spans fall
    # back to uniform attention over the band instead of the reference's NaN).
    idx = off + lax.broadcasted_iota(jnp.int32, (tw, band), 1)
    mask = (idx >= starts) & (idx < ends)              # [tW, band]
    s = jnp.where(mask, sb, jnp.float32(-1e30))        # [tW, band] f32

    # Softmax numerator/denominator in f32 (exp underflows to 0 on masked cols).
    m = jnp.max(s, axis=1, keepdims=True)              # [tW, 1]
    e = jnp.exp(s - m)                                  # [tW, band] f32
    l = jnp.sum(e, axis=1, keepdims=True)               # [tW, 1]

    # Unnormalized weighted sum on the MXU (bf16 operands, f32 accumulate);
    # normalize afterwards with an EUP reciprocal (free slot).
    acc = jnp.dot(e.astype(jnp.bfloat16), xb,
                  preferred_element_type=jnp.float32)   # [tW, D_pad] f32
    out_ref[...] = (acc * pl.reciprocal(l, approx=True)).astype(out_ref.dtype)
    # TODO(synk): training-mode dropout (Bernoulli mask + 1/(1-p) scale) not
    # applied; eval-mode dropout is the identity, which is what we compute.


def _vmem_budget_bytes(T_pad: int, D_pad: int, tW: int, band: int, kind: str) -> int:
    x_bytes = T_pad * D_pad * 2                 # resident bf16 x (Buffered(1))
    s_bytes = T_pad * 4                         # resident f32 scores (Buffered(1))
    bounds_bytes = 2 * tW * 128 * 4             # [tW,2] i32, lane-padded, 2 buffers
    out_bytes = 2 * tW * D_pad * 4              # f32 out block, 2 buffers
    # temporaries: x band slice + ~6 [tW, band] slabs (mask/iota/s/e/e_bf16/sum)
    tmp_bytes = band * D_pad * 2 + 6 * tW * band * 4
    total = x_bytes + s_bytes + bounds_bytes + out_bytes + tmp_bytes + (2 << 20)

    try:
        cap = int(pltpu.get_tpu_info().vmem_capacity_bytes)
    except Exception:
        cap = (64 << 20) if "v7" in kind else (128 << 20)
    cap = min((cap * 3) // 4, 100 << 20)        # ~48 MiB on v7x, <=100 MiB elsewhere
    return min(max(total, 32 << 20), cap)


def word_encoder_forward(x, attn_w, attn_b, starts, ends, *, tile_w=None):
    """words = softmax(log(mask) + (x @ w.T + b).T) @ x, tiled over words."""
    T, D = x.shape
    W = int(starts.shape[0])
    kind = _device_kind()

    # Generation-aware word tile: v5e MXU is 128-wide, v6e/v7x are 256-wide.
    if tile_w is None:
        tile_w = 128 if "v5" in kind else 256
    tW = min(tile_w, _round_up(W, 8))
    # v7x has 2 TensorCores: make sure the "parallel" word axis has >= 2 tiles.
    if "v7" in kind and pl.cdiv(W, tW) < 2 and W > 8:
        tW = max(8, _round_up(pl.cdiv(W, 2), 8))

    W_pad = _round_up(W, tW)
    T_pad = _round_up(T, 128)
    D_pad = _round_up(D, 128)
    n_tiles = W_pad // tW

    # Hoisted f32 attention scores: computed once, never recomputed per tile.
    scores = (x.astype(jnp.float32) @ attn_w.reshape(D, 1).astype(jnp.float32)
              + attn_b.astype(jnp.float32)).reshape(1, T)
    scores = jnp.pad(scores, ((0, 0), (0, T_pad - T)))

    x_bf16 = jnp.pad(x.astype(jnp.bfloat16), ((0, T_pad - T), (0, D_pad - D)))

    starts = starts.astype(jnp.int32)
    ends = ends.astype(jnp.int32)
    # Pad the word dim with copies of the last word: keeps tile bands tight and
    # avoids empty spans in the padded tail (rows are sliced away afterwards).
    if W_pad > W:
        starts_p = jnp.concatenate(
            [starts, jnp.full((W_pad - W,), starts[W - 1], jnp.int32)])
        ends_p = jnp.concatenate(
            [ends, jnp.full((W_pad - W,), ends[W - 1], jnp.int32)])
    else:
        starts_p, ends_p = starts, ends
    bounds = jnp.stack([starts_p, ends_p], axis=1)          # [W_pad, 2] i32

    # Per-tile subtoken band: 128-aligned start offset (dynamic, scalar-prefetched)
    # and a static band width = max tile span, rounded to a lane multiple.
    tile_lo = starts_p.reshape(n_tiles, tW).min(axis=1)
    tile_hi = ends_p.reshape(n_tiles, tW).max(axis=1)
    band_off = (tile_lo // 128) * 128
    # TODO(synk): the static band width needs concrete starts/ends; pass it
    # explicitly when calling under jit with traced word boundaries.
    band = int(jnp.max(tile_hi - band_off))
    band = min(max(_round_up(band, 128), 128), T_pad)
    band_off = jnp.minimum(band_off, T_pad - band).astype(jnp.int32)

    vmem_bytes = _vmem_budget_bytes(T_pad, D_pad, tW, band, kind)
    kernel = functools.partial(word_encoder_kernel, band=band)

    def _resident_spec(shape, index_map):
        # Constant-index_map inputs never change: single-buffer them.
        try:
            return pl.BlockSpec(shape, index_map, pipeline_mode=pl.Buffered(1))
        except TypeError:  # older BlockSpec without pipeline_mode
            return pl.BlockSpec(shape, index_map)

    out = pl.pallas_call(
        kernel,
        out_shape=jax.ShapeDtypeStruct((W_pad, D_pad), jnp.float32),
        grid_spec=pltpu.PrefetchScalarGridSpec(
            num_scalar_prefetch=1,
            grid=(n_tiles,),
            in_specs=[
                _resident_spec((T_pad, D_pad), lambda i, off: (0, 0)),  # x
                _resident_spec((1, T_pad), lambda i, off: (0, 0)),      # scores
                pl.BlockSpec((tW, 2), lambda i, off: (i, 0)),           # (start,end)
            ],
            out_specs=pl.BlockSpec((tW, D_pad), lambda i, off: (i, 0)),
        ),
        compiler_params=pltpu.CompilerParams(
            dimension_semantics=("parallel",),
            vmem_limit_bytes=vmem_bytes,
        ),
    )(band_off, x_bf16, scores, bounds)

    return out[:W, :D]


def cluster_ids(doc):
    """Plain-Python glue: cluster index per word (0 = non-coreferent)."""
    word2cluster = {
        word_i: i
        for i, cluster in enumerate(doc["word_clusters"], start=1)
        for word_i in cluster
    }
    return jnp.asarray(
        [word2cluster.get(w, 0) for w in range(len(doc["cased_words"]))],
        dtype=jnp.int32,
    )


def reference_forward(x, attn_w, attn_b, starts, ends):
    """Pure-JAX f32 reference mirroring the PyTorch module."""
    T = x.shape[0]
    scores = x @ attn_w.T + attn_b                 # [T, 1]
    idx = jnp.arange(T)[None, :]
    mask = (idx >= starts[:, None]) & (idx < ends[:, None])
    s = jnp.where(mask, scores.T, -jnp.inf)        # log(mask) + scores
    p = jax.nn.softmax(s, axis=1)
    return p @ x


if __name__ == "__main__":
    # Small synthetic "document": 16 subtokens, 128-dim bert embeddings, 8 words.
    n_subtokens, bert_dim, n_words = 16, 128, 8

    key = jax.random.PRNGKey(0)
    kx, kw, kb = jax.random.split(key, 3)
    x = jax.random.normal(kx, (n_subtokens, bert_dim), dtype=jnp.float32)
    # torch.nn.Linear(features, 1): weight [1, features], bias [1]
    attn_w = jax.random.normal(kw, (1, bert_dim), dtype=jnp.float32) * 0.05
    attn_b = jax.random.normal(kb, (1,), dtype=jnp.float32) * 0.05

    doc = {
        "word2subword": [[0, 2], [2, 3], [3, 5], [5, 8],
                         [8, 10], [10, 12], [12, 14], [14, 16]],
        "word_clusters": [[0, 3], [1, 5]],
        "cased_words": ["w%d" % i for i in range(n_words)],
    }
    boundaries = jnp.asarray(doc["word2subword"], dtype=jnp.int32)
    starts, ends = boundaries[:, 0], boundaries[:, 1]

    words = jax.block_until_ready(word_encoder_forward(x, attn_w, attn_b, starts, ends))
    cids = jax.block_until_ready(cluster_ids(doc))

    ref = reference_forward(x, attn_w, attn_b, starts, ends)
    assert words.shape == (n_words, bert_dim)
    assert cids.shape == (n_words,)
    assert bool(jnp.all(jnp.isfinite(words))), "non-finite output"
    # f32 scores; remaining error is bf16 MXU operands + approx reciprocal.
    assert jnp.allclose(words, ref, rtol=2e-2, atol=2e-2), "mismatch vs reference"

    print("KERNEL_OK")
</pallas_src>

<mosaic_0001>
module attributes {stable_mosaic.version = 11 : i64} {
  func.func @word_encoder_kernel(%arg0: i32, %arg1: memref<1xi32, #tpu.memory_space<smem>>, %arg2: memref<128x128xbf16, #tpu.memory_space<vmem>>, %arg3: memref<1x128xf32, #tpu.memory_space<vmem>>, %arg4: memref<8x2xi32, #tpu.memory_space<vmem>>, %arg5: memref<8x128xf32, #tpu.memory_space<vmem>>) attributes {dimension_semantics = [#tpu.dimension_semantics<parallel>], iteration_bounds = array<i64: 1>, scalar_prefetch = 1 : i64, scratch_operands = 0 : i64, tpu.core_type = #tpu.core_type<tc>, window_params = [{pipeline_mode = #tpu.pipeline_mode<synchronous>, transform_indices = @transform_0, window_bounds = array<i64: 128, 128>}, {pipeline_mode = #tpu.pipeline_mode<synchronous>, transform_indices = @transform_1, window_bounds = array<i64: 1, 128>}, {transform_indices = @transform_2, window_bounds = array<i64: 8, 2>}, {transform_indices = @transform_3, window_bounds = array<i64: 8, 128>}]} {
    %0 = arith.index_cast %arg0 : i32 to index
    %1 = memref.load %arg1[%0] : memref<1xi32, #tpu.memory_space<smem>>
    %2 = tpu.assume_multiple %1, 128 : i32
    %3 = arith.index_cast %2 : i32 to index
    %c0 = arith.constant 0 : index
    %4 = vector.load %arg2[%3, %c0] : memref<128x128xbf16, #tpu.memory_space<vmem>>, vector<128x128xbf16>
    %c0_0 = arith.constant 0 : index
    %5 = arith.index_cast %2 : i32 to index
    %6 = vector.load %arg3[%c0_0, %5] : memref<1x128xf32, #tpu.memory_space<vmem>>, vector<1x128xf32>
    %c0_1 = arith.constant 0 : index
    %c0_2 = arith.constant 0 : index
    %7 = vector.load %arg4[%c0_1, %c0_2] : memref<8x2xi32, #tpu.memory_space<vmem>>, vector<8x1xi32>
    %c0_3 = arith.constant 0 : index
    %c1 = arith.constant 1 : index
    %8 = vector.load %arg4[%c0_3, %c1] : memref<8x2xi32, #tpu.memory_space<vmem>>, vector<8x1xi32>
    %9 = tpu.iota {dimensions = array<i32: 1>} : vector<8x128xi32>
    %10 = vector.broadcast %2 : i32 to vector<8x128xi32>
    %11 = arith.addi %10, %9 : vector<8x128xi32>
    %12 = vector.broadcast %7 : vector<8x1xi32> to vector<8x128xi32>
    %13 = arith.cmpi sge, %11, %12 : vector<8x128xi32>
    %14 = vector.broadcast %8 : vector<8x1xi32> to vector<8x128xi32>
    %15 = arith.cmpi slt, %11, %14 : vector<8x128xi32>
    %16 = arith.andi %13, %15 : vector<8x128xi1>
    %cst = arith.constant -1.000000e+30 : f32
    %17 = vector.shape_cast %6 : vector<1x128xf32> to vector<1x128xf32>
    %18 = vector.broadcast %17 : vector<1x128xf32> to vector<8x128xf32>
    %19 = vector.broadcast %cst : f32 to vector<8x128xf32>
    %20 = arith.select %16, %18, %19 : vector<8x128xi1>, vector<8x128xf32>
    %cst_4 = arith.constant dense<0xFF800000> : vector<8xf32>
    %21 = vector.multi_reduction <maximumf>, %20, %cst_4 [1] : vector<8x128xf32> to vector<8xf32>
    %22 = vector.shape_cast %21 : vector<8xf32> to vector<8x1xf32>
    %23 = vector.broadcast %22 : vector<8x1xf32> to vector<8x128xf32>
    %24 = arith.subf %20, %23 : vector<8x128xf32>
    %25 = math.exp %24 : vector<8x128xf32>
    %cst_5 = arith.constant dense<0.000000e+00> : vector<8xf32>
    %26 = vector.multi_reduction <add>, %25, %cst_5 [1] : vector<8x128xf32> to vector<8xf32>
    %27 = vector.shape_cast %26 : vector<8xf32> to vector<8x1xf32>
    %28 = arith.truncf %25 : vector<8x128xf32> to vector<8x128xbf16>
    %cst_6 = arith.constant dense<0.000000e+00> : vector<8x128xf32>
    %29 = tpu.matmul %28, %4, %cst_6 {dimension_numbers = #tpu.dot_dimension_numbers<[1], [0], [0], [1], [0, 0, 1, 1], [], []>} : vector<8x128xbf16>, vector<128x128xbf16>, vector<8x128xf32> -> vector<8x128xf32>
    %30 = tpu.reciprocal %27 {approx = true} : vector<8x1xf32> -> vector<8x1xf32>
    %31 = vector.broadcast %30 : vector<8x1xf32> to vector<8x128xf32>
    %32 = arith.mulf %29, %31 : vector<8x128xf32>
    %c0_7 = arith.constant 0 : index
    %c0_8 = arith.constant 0 : index
    %33 = vector.load %arg5[%c0_7, %c0_8] : memref<8x128xf32, #tpu.memory_space<vmem>>, vector<8x128xf32>
    tpu.vector_store %arg5[%c0_7, %c0_8], %32 {strides = array<i32>} : memref<8x128xf32, #tpu.memory_space<vmem>>, vector<8x128xf32>,
    return
  }
  func.func @transform_0(%arg0: i32, %arg1: memref<1xi32, #tpu.memory_space<smem>>) -> (i32, i32) {
    %c0_i32 = arith.constant 0 : i32
    %c0_i32_0 = arith.constant 0 : i32
    %c0_i32_1 = arith.constant 0 : i32
    return %c0_i32, %c0_i32_0 : i32, i32
  }
  func.func @transform_1(%arg0: i32, %arg1: memref<1xi32, #tpu.memory_space<smem>>) -> (i32, i32) {
    %c0_i32 = arith.constant 0 : i32
    %c0_i32_0 = arith.constant 0 : i32
    %c0_i32_1 = arith.constant 0 : i32
    return %c0_i32, %c0_i32_0 : i32, i32
  }
  func.func @transform_2(%arg0: i32, %arg1: memref<1xi32, #tpu.memory_space<smem>>) -> (i32, i32) {
    %c0_i32 = arith.constant 0 : i32
    %c0_i32_0 = arith.constant 0 : i32
    return %arg0, %c0_i32 : i32, i32
  }
  func.func @transform_3(%arg0: i32, %arg1: memref<1xi32, #tpu.memory_space<smem>>) -> (i32, i32) {
    %c0_i32 = arith.constant 0 : i32
    %c0_i32_0 = arith.constant 0 : i32
    return %arg0, %c0_i32 : i32, i32
  }
}

</mosaic_0001>

<llo_original>
// kernel: tpu_custom_call.1
$region0: #{tpu_custom_call.1}
  #allocation0 [shape = 'u32[]', space=smem, size = 0x4, offset = 0x4, fixed_abs, tag = 'smem constant byte address 0x4 - core index']
  #allocation1 [shape = 'u32[144,128]{1,0:T(1,128)}', space=vmem, size = 0x12000, scoped, tag = 'internal scratch']
  #allocation2 [shape = 's32[1]{0}', space=sflag, size = 0x4, scoped, tag = 'scoped memory for tpu_custom_call.1']
  #allocation3 [shape = 's32[1]{0:T(128)S(6)}', space=smem, size = 0x200, scoped, tag = 'prefetched SMEM operand 0']
  %s0 = inlined_call_operand.<no memory space> [shape: s32[1], index: 0, kind: input, shape index: {}]
  %s1 = inlined_call_operand.hbm [shape: bf16[128,128], index: 1, kind: input, shape index: {}]
  %s2 = inlined_call_operand.vmem [shape: f32[1,128], index: 2, kind: input, shape index: {}]
  %s3 = inlined_call_operand.vmem [shape: s32[8,2], index: 3, kind: input, shape index: {}]
  %s4 = inlined_call_operand.hbm [shape: f32[8,128], index: 4, kind: output, shape index: {}]
  %s5 = sld [smem:[#allocation0]]
  $region26: #{tpu_custom_call.1} parent=0
    _
  %s7 = ssub.s32 1, %s5
  %s8 = scalar_select 0, %s7, %s5
  %9 = sst [smem:[#allocation3]] %s0
  $region1: #{tpu_custom_call.1} parent=0
    #allocation4 [shape = 'u8[32768]{0}', space=vmem, size = 0x8000, scoped, tag = 'input window, operand 1, single buffered']
    #allocation5 [shape = 's32[1]{0}', space=sflag, size = 0x4, scoped, tag = 'scoped memory for tpu_custom_call.1']
    #allocation6 [shape = 's32[1]{0}', space=sflag, size = 0x4, scoped, tag = 'scoped memory for tpu_custom_call.1']
    #allocation7 [shape = 'u8[4096]{0}', space=vmem, size = 0x1000, scoped, tag = 'output window, operand 0, single buffered']
    %10 = vsyncpa [#allocation5], 0
    %11 = vsyncpa [#allocation6], 0
    // Predicated region
    $region2: #{tpu_custom_call.1} parent=1 // pred_check
      _
    $region3: #{tpu_custom_call.1} parent=1 // pred_check_branch
      %13 = sbr.rel (0) target = $region5
    $region4: #{tpu_custom_call.1} parent=1 // pred_region
      %s15 = ssub.s32 1024, 1024
      %16 = vsyncadd [#allocation5], %s15
      %s17 = sshll.u32 [#allocation4], 4
      %s18 = int_to_ptr.vmem [resolvable:$true] %s17
      %23 = dma.hbm_to_vmem [thread:$0]  %s1, 1024, %s18, [#allocation5], 64, 64, 4
    $region5: #{tpu_custom_call.1} parent=1 // pred_fallthru
      _
    // Predicated region
    $region6: #{tpu_custom_call.1} parent=1 // pred_check
      _
    $region7: #{tpu_custom_call.1} parent=1 // pred_check_branch
      %25 = sbr.rel (0) target = $region9
    $region8: #{tpu_custom_call.1} parent=1 // pred_region
      _
    $region9: #{tpu_custom_call.1} parent=1 // pred_fallthru
      _
    // Predicated region
    $region10: #{tpu_custom_call.1} parent=1 // pred_check
      _
    $region11: #{tpu_custom_call.1} parent=1 // pred_check_branch
      %27 = sbr.rel (0) target = $region13
    $region12: #{tpu_custom_call.1} parent=1 // pred_region
      _
    $region13: #{tpu_custom_call.1} parent=1 // pred_fallthru
      _
    // Predicated region
    $region14: #{tpu_custom_call.1} parent=1 // pred_check
      _
    $region15: #{tpu_custom_call.1} parent=1 // pred_check_branch
      %29 = sbr.rel (0) target = $region17
    $region16: #{tpu_custom_call.1} parent=1 // pred_region
      %30 = dma.done [#allocation5], 1024
    $region17: #{tpu_custom_call.1} parent=1 // pred_fallthru
      _
    %s32 = sld [smem:[#allocation3]]
    %s33 = sshra.s32 %s32, 3
    %s34 = sand.u32 %s32, 7
    %s35 = smul.addr %s33, 4
    %s36 = scalar_lea.vmem [#allocation4], %s35
    %v37 = vld [vmem:[%s36] sm:$0xf]
    %v38 = vld [vmem:[%s36 + $0x4] sm:$0xf]
    %v39 = vld [vmem:[%s36 + $0x8] sm:$0xf]
    %v40 = vld [vmem:[%s36 + $0xc] sm:$0xf]
    %v41 = vld [vmem:[%s36 + $0x10] sm:$0xf]
    %v42 = vld [vmem:[%s36 + $0x14] sm:$0xf]
    %v43 = vld [vmem:[%s36 + $0x18] sm:$0xf]
    %v44 = vld [vmem:[%s36 + $0x1c] sm:$0xf]
    %v45 = vld [vmem:[%s36 + $0x20] sm:$0xf]
    %v46 = vld [vmem:[%s36 + $0x24] sm:$0xf]
    %v47 = vld [vmem:[%s36 + $0x28] sm:$0xf]
    %v48 = vld [vmem:[%s36 + $0x2c] sm:$0xf]
    %v49 = vld [vmem:[%s36 + $0x30] sm:$0xf]
    %v50 = vld [vmem:[%s36 + $0x34] sm:$0xf]
    %v51 = vld [vmem:[%s36 + $0x38] sm:$0xf]
    %v52 = vld [vmem:[%s36 + $0x3c] sm:$0xf]
    %s53 = sshra.s32 %s32, 7
    %s54 = sand.u32 %s32, 127
    %s55 = scalar_lea.vmem %s2, %s53
    %v56 = vld [vmem:[%s55] sm:$0x1]
    %v57 = vld [vmem:[%s3] sm:$0xff]
    %v58 = vlaneseq
    %v59 = vand.u32 %v58, 127
    %v60 = vstv %s32
    %v61 = vadd.s32 %v60, %v59
    %62 = vset.pattern.permute.xlu0 0
    %63 = vperm.xlu0 %62, %v57
    %v64 = vpop.permute.xlu0 %63
    %vm65 = vcmp.ge.s32.totalorder %v61, %v64
    %66 = vset.pattern.permute.xlu0 1
    %67 = vperm.xlu0 %66, %v57
    %v68 = vpop.permute.xlu0 %67
    %vm69 = vcmp.lt.s32.totalorder %v61, %v68
    %vm70 = vmand %vm65, %vm69
    %v72 = vlaneseq
    %v73 = vshrl.u32 %v72, 7
    %v74 = vsub.s32 0, %v73
    %v75 = vrot.slane %v56, %v74
    %v77 = vsel %vm70, %v75, -1e+30
    %78 = vmax.xlane.f32.xlu0 %v77
    %v79 = vpop.xlane.xlu0 %78
    %v80 = vsub.f32 %v77, %v79
    %v81 = vmul.f32 %v80, 1.442695
    %v82 = vpow.pop %v81
    %83 = vadd.xlane.f32.xlu0 %v82
    %v84 = vpop.xlane.xlu0 %83
    %v85 = vpack.c.bf16 %v82, %v82
    %v102 = vunpack.c.l.b16 %v37
    %v103 = vunpack.c.l.b16 %v38
    %v104 = vunpack.c.l.b16 %v39
    %v105 = vunpack.c.l.b16 %v40
    %v106 = vunpack.c.l.b16 %v41
    %v107 = vunpack.c.l.b16 %v42
    %v108 = vunpack.c.l.b16 %v43
    %v109 = vunpack.c.l.b16 %v44
    %v110 = vunpack.c.l.b16 %v45
    %v111 = vunpack.c.l.b16 %v46
    %v112 = vunpack.c.l.b16 %v47
    %v113 = vunpack.c.l.b16 %v48
    %v114 = vunpack.c.l.b16 %v49
    %v115 = vunpack.c.l.b16 %v50
    %v116 = vunpack.c.l.b16 %v51
    %v117 = vunpack.c.l.b16 %v52
    %v118 = vpack.c.b16 %v103, %v102
    %v119 = vpack.c.b16 %v105, %v104
    %v120 = vpack.c.b16 %v107, %v106
    %v121 = vpack.c.b16 %v109, %v108
    %v122 = vpack.c.b16 %v111, %v110
    %v123 = vpack.c.b16 %v113, %v112
    %v124 = vpack.c.b16 %v115, %v114
    %v125 = vpack.c.b16 %v117, %v116
    %134 = vmatprep.subr.bf16.mxu0 0
    %135 = vmatpush1.bf16.msra.mxu0 %v118
    %136 = vmatprep.subr.bf16.mxu0 0
    %137 = vmatpush1.bf16.msra.mxu0 %v119
    %138 = vmatprep.subr.bf16.mxu0 0
    %139 = vmatpush1.bf16.msra.mxu0 %v120
    %140 = vmatprep.subr.bf16.mxu0 0
    %141 = vmatpush1.bf16.msra.mxu0 %v121
    %142 = vmatprep.subr.bf16.mxu0 0
    %143 = vmatpush1.bf16.msra.mxu0 %v122
    %144 = vmatprep.subr.bf16.mxu0 0
    %145 = vmatpush1.bf16.msra.mxu0 %v123
    %146 = vmatprep.subr.bf16.mxu0 0
    %147 = vmatpush1.bf16.msra.mxu0 %v124
    %148 = vmatprep.subr.bf16.mxu0 0
    %149 = vmatpush1.bf16.msra.mxu0 %v125
    %150 = vmatprep.subr.bf16.mxu0 0
    %151 = vmatpush1.bf16.msra.mxu0 0
    %152 = vmatprep.subr.bf16.mxu0 0
    %153 = vmatpush1.bf16.msra.mxu0 0
    %154 = vmatprep.subr.bf16.mxu0 0
    %155 = vmatpush1.bf16.msra.mxu0 0
    %156 = vmatprep.subr.bf16.mxu0 0
    %157 = vmatpush1.bf16.msra.mxu0 0
    %158 = vmatprep.subr.bf16.mxu0 0
    %159 = vmatpush1.bf16.msra.mxu0 0
    %160 = vmatprep.subr.bf16.mxu0 0
    %161 = vmatpush1.bf16.msra.mxu0 0
    %162 = vmatprep.subr.bf16.mxu0 0
    %163 = vmatpush1.bf16.msra.mxu0 0
    %164 = vmatprep.subr.bf16.mxu0 0
    %165 = vmatpush1.bf16.msra.mxu0 0
    %166 = vmatprep.mubr.bf16.mxu0 0
    %167 = vmatmul.mubr.bf16.gmra.mrb[0].mxu0 %v85
    %v168 = vpop.f32.mrb[0].mxu0
    %v169 = vadd.f32 0.0, %v168
    %v170 = vpop.f32.mrb[0].mxu0
    %v171 = vpop.f32.mrb[0].mxu0
    %v172 = vpop.f32.mrb[0].mxu0
    %173 = vdwg.mxu0
    %v174 = vrcp.pop %v84
    %v175 = vmul.f32 %v169, %v174
    %176 = vst [vmem:[#allocation7] sm:$0xff] %v175
    // Predicated region
    $region18: #{tpu_custom_call.1} parent=1 // pred_check
      _
    $region19: #{tpu_custom_call.1} parent=1 // pred_check_branch
      %178 = sbr.rel (0) target = $region21
    $region20: #{tpu_custom_call.1} parent=1 // pred_region
      %s180 = ssub.s32 128, 128
      %181 = vsyncadd [#allocation6], %s180
      %s183 = sshll.u32 [#allocation7], 4
      %s184 = int_to_ptr.vmem [resolvable:$true] %s183
      %186 = dma.vmem_to_hbm [thread:$0]  %s184, 128, %s4, [#allocation6]
    $region21: #{tpu_custom_call.1} parent=1 // pred_fallthru
      _
    // Predicated region
    $region22: #{tpu_custom_call.1} parent=1 // pred_check
      _
    $region23: #{tpu_custom_call.1} parent=1 // pred_check_branch
      %188 = sbr.rel (0) target = $region25
    $region24: #{tpu_custom_call.1} parent=1 // pred_region
      %189 = dma.done [#allocation6], 128
    $region25: #{tpu_custom_call.1} parent=1 // pred_fallthru
      _
    %190 = vsyncpa [#allocation5], 1
    %191 = vsyncpa [#allocation6], 1

</llo_original>
